<compile_context>
chip_gen: v5e
topology: v5e:2x2
jax: 0.10.0
libtpu: 0.0.40
codegen_flags: <defaults>
</compile_context>

<pallas_src>
import functools

import jax
import jax.numpy as jnp
from jax import lax
from jax.experimental import pallas as pl
from jax.experimental.pallas import tpu as pltpu

EPS = 1e-5
LANE = 128
SUBLANE = 8


def _round_up(x, m):
    return (x + m - 1) // m * m


def _bottleneck_kernel(x_ref, w1_ref, w2_ref, w3_ref,
                       g1_ref, b1_ref, g2_ref, b2_ref, g3_ref, b3_ref,
                       maskl_ref, maskr_ref, valid_ref,
                       o_ref, *, inv_nl, mm_dtype, has_row_pad):
    """conv1x1 -> BN -> ReLU -> conv3(pad=1) -> BN -> ReLU -> conv1x1 -> BN -> +res -> ReLU."""
    nlp = o_ref.shape[0]

    def bn(h, g_ref, b_ref):
        # Training-mode BatchNorm1d (biased variance), one-pass stats.
        # Stats run as sublane reductions (XLU) instead of M=1 MXU matmuls.
        # Caller invariant: h == 0 on zero-padded rows/channels, so plain sums
        # are exact and padded channels end up with scale == shift == 0.
        s = jnp.sum(h, axis=0, keepdims=True)                   # (1, Cp)
        s2 = jnp.sum(h * h, axis=0, keepdims=True)              # (1, Cp)
        mu = s * inv_nl
        var = s2 * inv_nl - mu * mu
        scale = g_ref[...] * lax.rsqrt(var + EPS)               # folded affine
        shift = b_ref[...] - mu * scale
        return h * scale + shift                                # 2 VPU ops / elem

    def relu_keep_invariant(h):
        h = jnp.maximum(h, 0.0)
        if has_row_pad:
            # Re-zero sublane-padded rows so the next conv output (and hence the
            # next BN's statistics) stays exact.
            h = h * valid_ref[...]
        return h

    # ---- conv1 (kernel_size=1): channel matmul on the MXU ----
    h = jnp.dot(x_ref[...].astype(mm_dtype), w1_ref[...],
                preferred_element_type=jnp.float32)                         # (NLp, Pp) f32
    h = relu_keep_invariant(bn(h, g1_ref, b1_ref))

    # ---- conv2 (kernel_size=3, padding=1) ----
    # Neighbour taps via XLU sublane rolls (f32) + boundary/batch masks, then
    # three accumulating MXU dots -- no (NLp, 3Pp) concatenated temporary.
    h_prev = (pltpu.roll(h, shift=1, axis=0) * maskl_ref[...]).astype(mm_dtype)
    h_next = (pltpu.roll(h, shift=nlp - 1, axis=0) * maskr_ref[...]).astype(mm_dtype)
    h_c = h.astype(mm_dtype)
    h = (jnp.dot(h_prev, w2_ref[0], preferred_element_type=jnp.float32)
         + jnp.dot(h_c, w2_ref[1], preferred_element_type=jnp.float32)
         + jnp.dot(h_next, w2_ref[2], preferred_element_type=jnp.float32))  # (NLp, Pp)
    h = relu_keep_invariant(bn(h, g2_ref, b2_ref))

    # ---- conv3 (kernel_size=1): expansion matmul ----
    h = jnp.dot(h.astype(mm_dtype), w3_ref[...],
                preferred_element_type=jnp.float32)                         # (NLp, Coutp)
    h = bn(h, g3_ref, b3_ref)

    # ---- residual add + ReLU (f32); re-read x_ref so the full f32 input does
    # not stay live across all three stages ----
    o_ref[...] = jnp.maximum(h + x_ref[...], 0.0)


def bottleneck_pallas(x_ncl, w1, w2, w3, g1, b1, g2, b2, g3, b3,
                      matmul_dtype=jnp.bfloat16):
    """x_ncl: (N, C, L) f32; weights in PyTorch Conv1d layout (Cout, Cin, K)."""
    N, Cin, L = x_ncl.shape
    P = w1.shape[0]
    Cout = w3.shape[0]
    assert Cout == Cin, "downsample=None requires inplanes == planes * expansion"

    NL = N * L
    NLp = _round_up(NL, SUBLANE)
    Cinp = _round_up(Cin, LANE)
    Pp = _round_up(P, LANE)
    Coutp = _round_up(Cout, LANE)
    f32 = jnp.float32

    # ---- activations: NCL -> lane-dense flattened (NLp, Cinp), zero padded ----
    x_flat = jnp.transpose(x_ncl, (0, 2, 1)).reshape(NL, Cin).astype(f32)
    x_pad = jnp.zeros((NLp, Cinp), f32).at[:NL, :Cin].set(x_flat)

    # ---- weights repacked for channel-last matmuls, cast to matmul dtype ----
    w1_k = jnp.zeros((Cinp, Pp), f32).at[:Cin, :P].set(
        jnp.transpose(w1[:, :, 0])).astype(matmul_dtype)
    w2_t = jnp.transpose(w2, (2, 1, 0))                                   # (3, Cin=P, Cout=P)
    w2_k = jnp.zeros((3, Pp, Pp), f32).at[:, :P, :P].set(w2_t).astype(matmul_dtype)
    w3_k = jnp.zeros((Pp, Coutp), f32).at[:P, :Cout].set(
        jnp.transpose(w3[:, :, 0])).astype(matmul_dtype)

    # ---- BN affine params, zero-padded so padded channels stay exactly 0 ----
    def pad_vec(v, n):
        return jnp.zeros((1, n), f32).at[0, :v.shape[0]].set(v.astype(f32))
    g1r, b1r = pad_vec(g1, Pp), pad_vec(b1, Pp)
    g2r, b2r = pad_vec(g2, Pp), pad_vec(b2, Pp)
    g3r, b3r = pad_vec(g3, Coutp), pad_vec(b3, Coutp)

    # ---- conv2 boundary/batch masks + padded-row selector (tiny inputs;
    # in-kernel generation would need vectorized integer mod) ----
    l_idx = jnp.arange(NLp) % L
    real = jnp.arange(NLp) < NL
    mask_l = jnp.where(real & (l_idx != 0), 1.0, 0.0).reshape(NLp, 1).astype(f32)
    mask_r = jnp.where(real & (l_idx != L - 1), 1.0, 0.0).reshape(NLp, 1).astype(f32)
    valid = jnp.where(real, 1.0, 0.0).reshape(NLp, 1).astype(f32)

    vmem = functools.partial(pl.BlockSpec, memory_space=pltpu.MemorySpace.VMEM)
    kernel = functools.partial(_bottleneck_kernel, inv_nl=1.0 / NL,
                               mm_dtype=matmul_dtype, has_row_pad=(NLp != NL))

    # ---- VMEM budget: activations in/out, weights, f32 temps, bf16 conv2 taps.
    # Clamp is generation-aware: ~48 MiB on 64 MiB parts (v7x), ~100 MiB on
    # 128 MiB parts (v5e / v6e). ----
    mm_bytes = jnp.dtype(matmul_dtype).itemsize
    est = (4 * NLp * (Cinp + Coutp)                                   # x + out buffers
           + mm_bytes * (Cinp * Pp + 3 * Pp * Pp + Pp * Coutp)        # weights
           + 4 * NLp * (2 * Pp + Coutp)                               # f32 intermediates
           + mm_bytes * NLp * 3 * Pp                                  # conv2 tap operands
           + 4 * 3 * NLp)                                             # masks
    cap = 48 * 1024 * 1024
    try:
        phys = getattr(pltpu.get_tpu_info(), "vmem_capacity_bytes", None)
        if phys is not None and phys >= 100 * 1024 * 1024:
            cap = 100 * 1024 * 1024
    except Exception:
        pass
    vmem_limit = int(min(max(int(1.5 * est), 32 * 1024 * 1024), cap))

    out_pad = pl.pallas_call(
        kernel,
        out_shape=jax.ShapeDtypeStruct((NLp, Coutp), f32),
        in_specs=[vmem()] * 13,
        out_specs=vmem(),
        compiler_params=pltpu.CompilerParams(vmem_limit_bytes=vmem_limit),
    )(x_pad, w1_k, w2_k, w3_k, g1r, b1r, g2r, b2r, g3r, b3r,
      mask_l, mask_r, valid)

    out = out_pad[:NL, :Cout].reshape(N, L, Cout)
    return jnp.transpose(out, (0, 2, 1))                                   # back to (N, C, L)


# ---------------------------------------------------------------------------
# Pure-JAX reference (independent of the kernel) for correctness checks.
# ---------------------------------------------------------------------------
def bottleneck_ref(x, w1, w2, w3, g1, b1, g2, b2, g3, b3):
    dn = ('NCH', 'OIH', 'NCH')

    def bn(h, g, b):
        mu = jnp.mean(h, axis=(0, 2), keepdims=True)
        var = jnp.mean((h - mu) ** 2, axis=(0, 2), keepdims=True)
        return (h - mu) / jnp.sqrt(var + EPS) * g.reshape(1, -1, 1) + b.reshape(1, -1, 1)

    h = lax.conv_general_dilated(x, w1, (1,), 'VALID', dimension_numbers=dn)
    h = jax.nn.relu(bn(h, g1, b1))
    h = lax.conv_general_dilated(h, w2, (1,), [(1, 1)], dimension_numbers=dn)
    h = jax.nn.relu(bn(h, g2, b2))
    h = lax.conv_general_dilated(h, w3, (1,), 'VALID', dimension_numbers=dn)
    h = bn(h, g3, b3)
    return jax.nn.relu(h + x)


if __name__ == "__main__":
    # small shapes consistent with the module: Bottleneck(inplanes=16, planes=4)
    N, L = 2, 16
    planes = 4
    inplanes = planes * 4      # expansion=4, downsample=None => inplanes == 4*planes

    key = jax.random.PRNGKey(0)
    k = jax.random.split(key, 10)
    x = jax.random.normal(k[0], (N, inplanes, L), dtype=jnp.float32)        # NCL like torch
    w1 = 0.1 * jax.random.normal(k[1], (planes, inplanes, 1), jnp.float32)  # conv1
    w2 = 0.1 * jax.random.normal(k[2], (planes, planes, 3), jnp.float32)    # conv3(k=3)
    w3 = 0.1 * jax.random.normal(k[3], (planes * 4, planes, 1), jnp.float32)
    g1 = 1.0 + 0.1 * jax.random.normal(k[4], (planes,), jnp.float32)
    b1 = 0.1 * jax.random.normal(k[5], (planes,), jnp.float32)
    g2 = 1.0 + 0.1 * jax.random.normal(k[6], (planes,), jnp.float32)
    b2 = 0.1 * jax.random.normal(k[7], (planes,), jnp.float32)
    g3 = 1.0 + 0.1 * jax.random.normal(k[8], (planes * 4,), jnp.float32)
    b3 = 0.1 * jax.random.normal(k[9], (planes * 4,), jnp.float32)

    ref = bottleneck_ref(x, w1, w2, w3, g1, b1, g2, b2, g3, b3)

    # Fast path (bf16 MXU operands, f32 accumulation / BN / residual).
    out_bf16 = bottleneck_pallas(x, w1, w2, w3, g1, b1, g2, b2, g3, b3,
                                 matmul_dtype=jnp.bfloat16)
    out_bf16 = jax.block_until_ready(out_bf16)
    assert out_bf16.shape == (N, inplanes, L)
    assert jnp.allclose(out_bf16, ref, atol=3e-2, rtol=3e-2), "bf16 kernel mismatch vs reference"

    # Full-f32 path for a tight numerical check of the kernel structure.
    out_f32 = bottleneck_pallas(x, w1, w2, w3, g1, b1, g2, b2, g3, b3,
                                matmul_dtype=jnp.float32)
    out_f32 = jax.block_until_ready(out_f32)
    assert jnp.allclose(out_f32, ref, atol=2e-3, rtol=2e-3), "f32 kernel mismatch vs reference"

    print("KERNEL_OK")
</pallas_src>

<mosaic_0001>
module attributes {stable_mosaic.version = 11 : i64} {
  func.func @_bottleneck_kernel(%arg0: memref<32x128xf32, #tpu.memory_space<vmem>>, %arg1: memref<128x128xbf16, #tpu.memory_space<vmem>>, %arg2: memref<3x128x128xbf16, #tpu.memory_space<vmem>>, %arg3: memref<128x128xbf16, #tpu.memory_space<vmem>>, %arg4: memref<1x128xf32, #tpu.memory_space<vmem>>, %arg5: memref<1x128xf32, #tpu.memory_space<vmem>>, %arg6: memref<1x128xf32, #tpu.memory_space<vmem>>, %arg7: memref<1x128xf32, #tpu.memory_space<vmem>>, %arg8: memref<1x128xf32, #tpu.memory_space<vmem>>, %arg9: memref<1x128xf32, #tpu.memory_space<vmem>>, %arg10: memref<32x1xf32, #tpu.memory_space<vmem>>, %arg11: memref<32x1xf32, #tpu.memory_space<vmem>>, %arg12: memref<32x1xf32, #tpu.memory_space<vmem>>, %arg13: memref<32x128xf32, #tpu.memory_space<vmem>>) attributes {dimension_semantics = [], scalar_prefetch = 0 : i64, scratch_operands = 0 : i64, tpu.core_type = #tpu.core_type<tc>} {
    %c0 = arith.constant 0 : index
    %c0_0 = arith.constant 0 : index
    %0 = vector.load %arg0[%c0, %c0_0] : memref<32x128xf32, #tpu.memory_space<vmem>>, vector<32x128xf32>
    %1 = arith.truncf %0 : vector<32x128xf32> to vector<32x128xbf16>
    %c0_1 = arith.constant 0 : index
    %c0_2 = arith.constant 0 : index
    %2 = vector.load %arg1[%c0_1, %c0_2] : memref<128x128xbf16, #tpu.memory_space<vmem>>, vector<128x128xbf16>
    %cst = arith.constant dense<0.000000e+00> : vector<32x128xf32>
    %3 = tpu.matmul %1, %2, %cst {dimension_numbers = #tpu.dot_dimension_numbers<[1], [0], [0], [1], [0, 0, 1, 1], [], []>} : vector<32x128xbf16>, vector<128x128xbf16>, vector<32x128xf32> -> vector<32x128xf32>
    %cst_3 = arith.constant dense<0.000000e+00> : vector<128xf32>
    %4 = vector.multi_reduction <add>, %3, %cst_3 [0] : vector<32x128xf32> to vector<128xf32>
    %5 = vector.shape_cast %4 : vector<128xf32> to vector<1x128xf32>
    %6 = arith.mulf %3, %3 : vector<32x128xf32>
    %cst_4 = arith.constant dense<0.000000e+00> : vector<128xf32>
    %7 = vector.multi_reduction <add>, %6, %cst_4 [0] : vector<32x128xf32> to vector<128xf32>
    %8 = vector.shape_cast %7 : vector<128xf32> to vector<1x128xf32>
    %cst_5 = arith.constant 3.125000e-02 : f32
    %9 = vector.broadcast %cst_5 : f32 to vector<1x128xf32>
    %10 = arith.mulf %5, %9 : vector<1x128xf32>
    %cst_6 = arith.constant 3.125000e-02 : f32
    %11 = vector.broadcast %cst_6 : f32 to vector<1x128xf32>
    %12 = arith.mulf %8, %11 : vector<1x128xf32>
    %13 = arith.mulf %10, %10 : vector<1x128xf32>
    %14 = arith.subf %12, %13 : vector<1x128xf32>
    %c0_7 = arith.constant 0 : index
    %c0_8 = arith.constant 0 : index
    %15 = vector.load %arg4[%c0_7, %c0_8] : memref<1x128xf32, #tpu.memory_space<vmem>>, vector<1x128xf32>
    %cst_9 = arith.constant 9.99999974E-6 : f32
    %16 = vector.broadcast %cst_9 : f32 to vector<1x128xf32>
    %17 = arith.addf %14, %16 : vector<1x128xf32>
    %18 = math.rsqrt %17 : vector<1x128xf32>
    %19 = arith.mulf %15, %18 : vector<1x128xf32>
    %c0_10 = arith.constant 0 : index
    %c0_11 = arith.constant 0 : index
    %20 = vector.load %arg5[%c0_10, %c0_11] : memref<1x128xf32, #tpu.memory_space<vmem>>, vector<1x128xf32>
    %21 = arith.mulf %10, %19 : vector<1x128xf32>
    %22 = arith.subf %20, %21 : vector<1x128xf32>
    %23 = vector.broadcast %19 : vector<1x128xf32> to vector<32x128xf32>
    %24 = arith.mulf %3, %23 : vector<32x128xf32>
    %25 = vector.broadcast %22 : vector<1x128xf32> to vector<32x128xf32>
    %26 = arith.addf %24, %25 : vector<32x128xf32>
    %cst_12 = arith.constant 0.000000e+00 : f32
    %27 = vector.broadcast %cst_12 : f32 to vector<32x128xf32>
    %28 = arith.maximumf %26, %27 : vector<32x128xf32>
    %c1_i32 = arith.constant 1 : i32
    %29 = tpu.dynamic_rotate %28 by %c1_i32 dim 0 : vector<32x128xf32>, i32 -> vector<32x128xf32>
    %c0_13 = arith.constant 0 : index
    %c0_14 = arith.constant 0 : index
    %30 = vector.load %arg10[%c0_13, %c0_14] : memref<32x1xf32, #tpu.memory_space<vmem>>, vector<32x1xf32>
    %31 = vector.broadcast %30 : vector<32x1xf32> to vector<32x128xf32>
    %32 = arith.mulf %29, %31 : vector<32x128xf32>
    %33 = arith.truncf %32 : vector<32x128xf32> to vector<32x128xbf16>
    %c31_i32 = arith.constant 31 : i32
    %34 = tpu.dynamic_rotate %28 by %c31_i32 dim 0 : vector<32x128xf32>, i32 -> vector<32x128xf32>
    %c0_15 = arith.constant 0 : index
    %c0_16 = arith.constant 0 : index
    %35 = vector.load %arg11[%c0_15, %c0_16] : memref<32x1xf32, #tpu.memory_space<vmem>>, vector<32x1xf32>
    %36 = vector.broadcast %35 : vector<32x1xf32> to vector<32x128xf32>
    %37 = arith.mulf %34, %36 : vector<32x128xf32>
    %38 = arith.truncf %37 : vector<32x128xf32> to vector<32x128xbf16>
    %39 = arith.truncf %28 : vector<32x128xf32> to vector<32x128xbf16>
    %c0_17 = arith.constant 0 : index
    %c0_18 = arith.constant 0 : index
    %c0_19 = arith.constant 0 : index
    %40 = vector.load %arg2[%c0_17, %c0_18, %c0_19] : memref<3x128x128xbf16, #tpu.memory_space<vmem>>, vector<1x128x128xbf16>
    %41 = vector.shape_cast %40 : vector<1x128x128xbf16> to vector<128x128xbf16>
    %cst_20 = arith.constant dense<0.000000e+00> : vector<32x128xf32>
    %42 = tpu.matmul %33, %41, %cst_20 {dimension_numbers = #tpu.dot_dimension_numbers<[1], [0], [0], [1], [0, 0, 1, 1], [], []>} : vector<32x128xbf16>, vector<128x128xbf16>, vector<32x128xf32> -> vector<32x128xf32>
    %c1 = arith.constant 1 : index
    %c0_21 = arith.constant 0 : index
    %c0_22 = arith.constant 0 : index
    %43 = vector.load %arg2[%c1, %c0_21, %c0_22] : memref<3x128x128xbf16, #tpu.memory_space<vmem>>, vector<1x128x128xbf16>
    %44 = vector.shape_cast %43 : vector<1x128x128xbf16> to vector<128x128xbf16>
    %cst_23 = arith.constant dense<0.000000e+00> : vector<32x128xf32>
    %45 = tpu.matmul %39, %44, %cst_23 {dimension_numbers = #tpu.dot_dimension_numbers<[1], [0], [0], [1], [0, 0, 1, 1], [], []>} : vector<32x128xbf16>, vector<128x128xbf16>, vector<32x128xf32> -> vector<32x128xf32>
    %46 = arith.addf %42, %45 : vector<32x128xf32>
    %c2 = arith.constant 2 : index
    %c0_24 = arith.constant 0 : index
    %c0_25 = arith.constant 0 : index
    %47 = vector.load %arg2[%c2, %c0_24, %c0_25] : memref<3x128x128xbf16, #tpu.memory_space<vmem>>, vector<1x128x128xbf16>
    %48 = vector.shape_cast %47 : vector<1x128x128xbf16> to vector<128x128xbf16>
    %cst_26 = arith.constant dense<0.000000e+00> : vector<32x128xf32>
    %49 = tpu.matmul %38, %48, %cst_26 {dimension_numbers = #tpu.dot_dimension_numbers<[1], [0], [0], [1], [0, 0, 1, 1], [], []>} : vector<32x128xbf16>, vector<128x128xbf16>, vector<32x128xf32> -> vector<32x128xf32>
    %50 = arith.addf %46, %49 : vector<32x128xf32>
    %cst_27 = arith.constant dense<0.000000e+00> : vector<128xf32>
    %51 = vector.multi_reduction <add>, %50, %cst_27 [0] : vector<32x128xf32> to vector<128xf32>
    %52 = vector.shape_cast %51 : vector<128xf32> to vector<1x128xf32>
    %53 = arith.mulf %50, %50 : vector<32x128xf32>
    %cst_28 = arith.constant dense<0.000000e+00> : vector<128xf32>
    %54 = vector.multi_reduction <add>, %53, %cst_28 [0] : vector<32x128xf32> to vector<128xf32>
    %55 = vector.shape_cast %54 : vector<128xf32> to vector<1x128xf32>
    %cst_29 = arith.constant 3.125000e-02 : f32
    %56 = vector.broadcast %cst_29 : f32 to vector<1x128xf32>
    %57 = arith.mulf %52, %56 : vector<1x128xf32>
    %cst_30 = arith.constant 3.125000e-02 : f32
    %58 = vector.broadcast %cst_30 : f32 to vector<1x128xf32>
    %59 = arith.mulf %55, %58 : vector<1x128xf32>
    %60 = arith.mulf %57, %57 : vector<1x128xf32>
    %61 = arith.subf %59, %60 : vector<1x128xf32>
    %c0_31 = arith.constant 0 : index
    %c0_32 = arith.constant 0 : index
    %62 = vector.load %arg6[%c0_31, %c0_32] : memref<1x128xf32, #tpu.memory_space<vmem>>, vector<1x128xf32>
    %cst_33 = arith.constant 9.99999974E-6 : f32
    %63 = vector.broadcast %cst_33 : f32 to vector<1x128xf32>
    %64 = arith.addf %61, %63 : vector<1x128xf32>
    %65 = math.rsqrt %64 : vector<1x128xf32>
    %66 = arith.mulf %62, %65 : vector<1x128xf32>
    %c0_34 = arith.constant 0 : index
    %c0_35 = arith.constant 0 : index
    %67 = vector.load %arg7[%c0_34, %c0_35] : memref<1x128xf32, #tpu.memory_space<vmem>>, vector<1x128xf32>
    %68 = arith.mulf %57, %66 : vector<1x128xf32>
    %69 = arith.subf %67, %68 : vector<1x128xf32>
    %70 = vector.broadcast %66 : vector<1x128xf32> to vector<32x128xf32>
    %71 = arith.mulf %50, %70 : vector<32x128xf32>
    %72 = vector.broadcast %69 : vector<1x128xf32> to vector<32x128xf32>
    %73 = arith.addf %71, %72 : vector<32x128xf32>
    %cst_36 = arith.constant 0.000000e+00 : f32
    %74 = vector.broadcast %cst_36 : f32 to vector<32x128xf32>
    %75 = arith.maximumf %73, %74 : vector<32x128xf32>
    %76 = arith.truncf %75 : vector<32x128xf32> to vector<32x128xbf16>
    %c0_37 = arith.constant 0 : index
    %c0_38 = arith.constant 0 : index
    %77 = vector.load %arg3[%c0_37, %c0_38] : memref<128x128xbf16, #tpu.memory_space<vmem>>, vector<128x128xbf16>
    %cst_39 = arith.constant dense<0.000000e+00> : vector<32x128xf32>
    %78 = tpu.matmul %76, %77, %cst_39 {dimension_numbers = #tpu.dot_dimension_numbers<[1], [0], [0], [1], [0, 0, 1, 1], [], []>} : vector<32x128xbf16>, vector<128x128xbf16>, vector<32x128xf32> -> vector<32x128xf32>
    %cst_40 = arith.constant dense<0.000000e+00> : vector<128xf32>
    %79 = vector.multi_reduction <add>, %78, %cst_40 [0] : vector<32x128xf32> to vector<128xf32>
    %80 = vector.shape_cast %79 : vector<128xf32> to vector<1x128xf32>
    %81 = arith.mulf %78, %78 : vector<32x128xf32>
    %cst_41 = arith.constant dense<0.000000e+00> : vector<128xf32>
    %82 = vector.multi_reduction <add>, %81, %cst_41 [0] : vector<32x128xf32> to vector<128xf32>
    %83 = vector.shape_cast %82 : vector<128xf32> to vector<1x128xf32>
    %cst_42 = arith.constant 3.125000e-02 : f32
    %84 = vector.broadcast %cst_42 : f32 to vector<1x128xf32>
    %85 = arith.mulf %80, %84 : vector<1x128xf32>
    %cst_43 = arith.constant 3.125000e-02 : f32
    %86 = vector.broadcast %cst_43 : f32 to vector<1x128xf32>
    %87 = arith.mulf %83, %86 : vector<1x128xf32>
    %88 = arith.mulf %85, %85 : vector<1x128xf32>
    %89 = arith.subf %87, %88 : vector<1x128xf32>
    %c0_44 = arith.constant 0 : index
    %c0_45 = arith.constant 0 : index
    %90 = vector.load %arg8[%c0_44, %c0_45] : memref<1x128xf32, #tpu.memory_space<vmem>>, vector<1x128xf32>
    %cst_46 = arith.constant 9.99999974E-6 : f32
    %91 = vector.broadcast %cst_46 : f32 to vector<1x128xf32>
    %92 = arith.addf %89, %91 : vector<1x128xf32>
    %93 = math.rsqrt %92 : vector<1x128xf32>
    %94 = arith.mulf %90, %93 : vector<1x128xf32>
    %c0_47 = arith.constant 0 : index
    %c0_48 = arith.constant 0 : index
    %95 = vector.load %arg9[%c0_47, %c0_48] : memref<1x128xf32, #tpu.memory_space<vmem>>, vector<1x128xf32>
    %96 = arith.mulf %85, %94 : vector<1x128xf32>
    %97 = arith.subf %95, %96 : vector<1x128xf32>
    %98 = vector.broadcast %94 : vector<1x128xf32> to vector<32x128xf32>
    %99 = arith.mulf %78, %98 : vector<32x128xf32>
    %100 = vector.broadcast %97 : vector<1x128xf32> to vector<32x128xf32>
    %101 = arith.addf %99, %100 : vector<32x128xf32>
    %c0_49 = arith.constant 0 : index
    %c0_50 = arith.constant 0 : index
    %102 = vector.load %arg0[%c0_49, %c0_50] : memref<32x128xf32, #tpu.memory_space<vmem>>, vector<32x128xf32>
    %103 = arith.addf %101, %102 : vector<32x128xf32>
    %cst_51 = arith.constant 0.000000e+00 : f32
    %104 = vector.broadcast %cst_51 : f32 to vector<32x128xf32>
    %105 = arith.maximumf %103, %104 : vector<32x128xf32>
    %c0_52 = arith.constant 0 : index
    %c0_53 = arith.constant 0 : index
    %106 = vector.load %arg13[%c0_52, %c0_53] : memref<32x128xf32, #tpu.memory_space<vmem>>, vector<32x128xf32>
    tpu.vector_store %arg13[%c0_52, %c0_53], %105 {strides = array<i32>} : memref<32x128xf32, #tpu.memory_space<vmem>>, vector<32x128xf32>,
    return
  }
}

</mosaic_0001>

<llo_original>
// kernel: tpu_custom_call.1
$region0: #{tpu_custom_call.1}
  #allocation0 [shape = 'u32[]', space=smem, size = 0x4, offset = 0x4, fixed_abs, tag = 'smem constant byte address 0x4 - core index']
  #allocation1 [shape = 'u32[72,128]{1,0:T(1,128)}', space=vmem, size = 0x9000, scoped, tag = 'internal scratch']
  %s0 = inlined_call_operand.vmem [shape: f32[32,128], index: 0, kind: input, shape index: {}]
  %s1 = inlined_call_operand.vmem [shape: bf16[128,128], index: 1, kind: input, shape index: {}]
  %s2 = inlined_call_operand.hbm [shape: bf16[3,128,128], index: 2, kind: input, shape index: {}]
  %s3 = inlined_call_operand.hbm [shape: bf16[128,128], index: 3, kind: input, shape index: {}]
  %s4 = inlined_call_operand.vmem [shape: f32[1,128], index: 4, kind: input, shape index: {}]
  %s5 = inlined_call_operand.vmem [shape: f32[1,128], index: 5, kind: input, shape index: {}]
  %s6 = inlined_call_operand.vmem [shape: f32[1,128], index: 6, kind: input, shape index: {}]
  %s7 = inlined_call_operand.vmem [shape: f32[1,128], index: 7, kind: input, shape index: {}]
  %s8 = inlined_call_operand.vmem [shape: f32[1,128], index: 8, kind: input, shape index: {}]
  %s9 = inlined_call_operand.vmem [shape: f32[1,128], index: 9, kind: input, shape index: {}]
  %s10 = inlined_call_operand.vmem [shape: f32[32,1], index: 10, kind: input, shape index: {}]
  %s11 = inlined_call_operand.vmem [shape: f32[32,1], index: 11, kind: input, shape index: {}]
  %s12 = inlined_call_operand.vmem [shape: f32[32,1], index: 12, kind: input, shape index: {}]
  %s13 = inlined_call_operand.hbm [shape: f32[32,128], index: 13, kind: output, shape index: {}]
  %s14 = sld [smem:[#allocation0]]
  $region70: #{tpu_custom_call.1} parent=0
    _
  %s16 = ssub.s32 1, %s14
  %s17 = scalar_select 0, %s16, %s14
  $region1: #{tpu_custom_call.1} parent=0
    #allocation2 [shape = 'u8[98304]{0}', space=vmem, size = 0x18000, scoped, tag = 'input window, operand 2, single buffered']
    #allocation3 [shape = 's32[1]{0}', space=sflag, size = 0x4, scoped, tag = 'scoped memory for tpu_custom_call.1']
    #allocation4 [shape = 's32[1]{0}', space=sflag, size = 0x4, scoped, tag = 'scoped memory for tpu_custom_call.1']
    #allocation5 [shape = 'u8[32768]{0}', space=vmem, size = 0x8000, scoped, tag = 'input window, operand 3, single buffered']
    #allocation6 [shape = 's32[1]{0}', space=sflag, size = 0x4, scoped, tag = 'scoped memory for tpu_custom_call.1']
    #allocation7 [shape = 'u8[16384]{0}', space=vmem, size = 0x4000, scoped, tag = 'output window, operand 0, single buffered']
    %18 = vsyncpa [#allocation3], 0
    %19 = vsyncpa [#allocation6], 0
    %20 = vsyncpa [#allocation4], 0
    // Predicated region
    $region2: #{tpu_custom_call.1} parent=1 // pred_check
      _
    $region3: #{tpu_custom_call.1} parent=1 // pred_check_branch
      %22 = sbr.rel (0) target = $region5
    $region4: #{tpu_custom_call.1} parent=1 // pred_region
      _
    $region5: #{tpu_custom_call.1} parent=1 // pred_fallthru
      _
    // Predicated region
    $region6: #{tpu_custom_call.1} parent=1 // pred_check
      _
    $region7: #{tpu_custom_call.1} parent=1 // pred_check_branch
      %24 = sbr.rel (0) target = $region9
    $region8: #{tpu_custom_call.1} parent=1 // pred_region
      _
    $region9: #{tpu_custom_call.1} parent=1 // pred_fallthru
      _
    // Predicated region
    $region10: #{tpu_custom_call.1} parent=1 // pred_check
      _
    $region11: #{tpu_custom_call.1} parent=1 // pred_check_branch
      %26 = sbr.rel (0) target = $region13
    $region12: #{tpu_custom_call.1} parent=1 // pred_region
      %28 = vsyncadd [#allocation3], 0
      %s29 = sshll.u32 %s2, 4
      %s30 = int_to_ptr.hbm [resolvable:$true] %s29
      %s31 = sshll.u32 [#allocation2], 4
      %s32 = int_to_ptr.vmem [resolvable:$true] %s31
      %37 = dma.hbm_to_vmem [thread:$0]  %s30, 3072, %s32, [#allocation3], 64, 64, 4
    $region13: #{tpu_custom_call.1} parent=1 // pred_fallthru
      _
    // Predicated region
    $region14: #{tpu_custom_call.1} parent=1 // pred_check
      _
    $region15: #{tpu_custom_call.1} parent=1 // pred_check_branch
      %39 = sbr.rel (0) target = $region17
    $region16: #{tpu_custom_call.1} parent=1 // pred_region
      %41 = vsyncadd [#allocation6], 0
      %s42 = sshll.u32 %s3, 4
      %s43 = int_to_ptr.hbm [resolvable:$true] %s42
      %s44 = sshll.u32 [#allocation5], 4
      %s45 = int_to_ptr.vmem [resolvable:$true] %s44
      %50 = dma.hbm_to_vmem [thread:$0]  %s43, 1024, %s45, [#allocation6], 64, 64, 4
    $region17: #{tpu_custom_call.1} parent=1 // pred_fallthru
      _
    // Predicated region
    $region18: #{tpu_custom_call.1} parent=1 // pred_check
      _
    $region19: #{tpu_custom_call.1} parent=1 // pred_check_branch
      %52 = sbr.rel (0) target = $region21
    $region20: #{tpu_custom_call.1} parent=1 // pred_region
      _
    $region21: #{tpu_custom_call.1} parent=1 // pred_fallthru
      _
    // Predicated region
    $region22: #{tpu_custom_call.1} parent=1 // pred_check
      _
    $region23: #{tpu_custom_call.1} parent=1 // pred_check_branch
      %54 = sbr.rel (0) target = $region25
    $region24: #{tpu_custom_call.1} parent=1 // pred_region
      _
    $region25: #{tpu_custom_call.1} parent=1 // pred_fallthru
      _
    // Predicated region
    $region26: #{tpu_custom_call.1} parent=1 // pred_check
      _
    $region27: #{tpu_custom_call.1} parent=1 // pred_check_branch
      %56 = sbr.rel (0) target = $region29
    $region28: #{tpu_custom_call.1} parent=1 // pred_region
      _
    $region29: #{tpu_custom_call.1} parent=1 // pred_fallthru
      _
    // Predicated region
    $region30: #{tpu_custom_call.1} parent=1 // pred_check
      _
    $region31: #{tpu_custom_call.1} parent=1 // pred_check_branch
      %58 = sbr.rel (0) target = $region33
    $region32: #{tpu_custom_call.1} parent=1 // pred_region
      _
    $region33: #{tpu_custom_call.1} parent=1 // pred_fallthru
      _
    // Predicated region
    $region34: #{tpu_custom_call.1} parent=1 // pred_check
      _
    $region35: #{tpu_custom_call.1} parent=1 // pred_check_branch
      %60 = sbr.rel (0) target = $region37
    $region36: #{tpu_custom_call.1} parent=1 // pred_region
      _
    $region37: #{tpu_custom_call.1} parent=1 // pred_fallthru
      _
    // Predicated region
    $region38: #{tpu_custom_call.1} parent=1 // pred_check
      _
    $region39: #{tpu_custom_call.1} parent=1 // pred_check_branch
      %62 = sbr.rel (0) target = $region41
    $region40: #{tpu_custom_call.1} parent=1 // pred_region
      _
    $region41: #{tpu_custom_call.1} parent=1 // pred_fallthru
      _
    // Predicated region
    $region42: #{tpu_custom_call.1} parent=1 // pred_check
      _
    $region43: #{tpu_custom_call.1} parent=1 // pred_check_branch
      %64 = sbr.rel (0) target = $region45
    $region44: #{tpu_custom_call.1} parent=1 // pred_region
      _
    $region45: #{tpu_custom_call.1} parent=1 // pred_fallthru
      _
    // Predicated region
    $region46: #{tpu_custom_call.1} parent=1 // pred_check
      _
    $region47: #{tpu_custom_call.1} parent=1 // pred_check_branch
      %66 = sbr.rel (0) target = $region49
    $region48: #{tpu_custom_call.1} parent=1 // pred_region
      _
    $region49: #{tpu_custom_call.1} parent=1 // pred_fallthru
      _
    // Predicated region
    $region50: #{tpu_custom_call.1} parent=1 // pred_check
      _
    $region51: #{tpu_custom_call.1} parent=1 // pred_check_branch
      %68 = sbr.rel (0) target = $region53
    $region52: #{tpu_custom_call.1} parent=1 // pred_region
      _
    $region53: #{tpu_custom_call.1} parent=1 // pred_fallthru
      _
    // Predicated region
    $region54: #{tpu_custom_call.1} parent=1 // pred_check
      _
    $region55: #{tpu_custom_call.1} parent=1 // pred_check_branch
      %70 = sbr.rel (0) target = $region57
    $region56: #{tpu_custom_call.1} parent=1 // pred_region
      %72 = dma.done [#allocation3], 3072
    $region57: #{tpu_custom_call.1} parent=1 // pred_fallthru
      _
    // Predicated region
    $region58: #{tpu_custom_call.1} parent=1 // pred_check
      _
    $region59: #{tpu_custom_call.1} parent=1 // pred_check_branch
      %74 = sbr.rel (0) target = $region61
    $region60: #{tpu_custom_call.1} parent=1 // pred_region
      %76 = dma.done [#allocation6], 1024
    $region61: #{tpu_custom_call.1} parent=1 // pred_fallthru
      _
    %v77 = vld [vmem:[%s0] sm:$0xff]
    %v78 = vld [vmem:[%s0 + $0x8] sm:$0xff]
    %v79 = vld [vmem:[%s0 + $0x10] sm:$0xff]
    %v80 = vld [vmem:[%s0 + $0x18] sm:$0xff]
    %v81 = vpack.c.bf16 %v78, %v77
    %v82 = vpack.c.bf16 %v80, %v79
    %v83 = vld [vmem:[%s1] sm:$0xf]
    %v84 = vld [vmem:[%s1 + $0x4] sm:$0xf]
    %v85 = vld [vmem:[%s1 + $0x8] sm:$0xf]
    %v86 = vld [vmem:[%s1 + $0xc] sm:$0xf]
    %v87 = vld [vmem:[%s1 + $0x10] sm:$0xf]
    %v88 = vld [vmem:[%s1 + $0x14] sm:$0xf]
    %v89 = vld [vmem:[%s1 + $0x18] sm:$0xf]
    %v90 = vld [vmem:[%s1 + $0x1c] sm:$0xf]
    %v91 = vld [vmem:[%s1 + $0x20] sm:$0xf]
    %v92 = vld [vmem:[%s1 + $0x24] sm:$0xf]
    %v93 = vld [vmem:[%s1 + $0x28] sm:$0xf]
    %v94 = vld [vmem:[%s1 + $0x2c] sm:$0xf]
    %v95 = vld [vmem:[%s1 + $0x30] sm:$0xf]
    %v96 = vld [vmem:[%s1 + $0x34] sm:$0xf]
    %v97 = vld [vmem:[%s1 + $0x38] sm:$0xf]
    %v98 = vld [vmem:[%s1 + $0x3c] sm:$0xf]
    %v115 = vunpack.c.l.b16 %v83
    %v116 = vunpack.c.l.b16 %v84
    %v117 = vunpack.c.l.b16 %v85
    %v118 = vunpack.c.l.b16 %v86
    %v119 = vunpack.c.l.b16 %v87
    %v120 = vunpack.c.l.b16 %v88
    %v121 = vunpack.c.l.b16 %v89
    %v122 = vunpack.c.l.b16 %v90
    %v123 = vunpack.c.l.b16 %v91
    %v124 = vunpack.c.l.b16 %v92
    %v125 = vunpack.c.l.b16 %v93
    %v126 = vunpack.c.l.b16 %v94
    %v127 = vunpack.c.l.b16 %v95
    %v128 = vunpack.c.l.b16 %v96
    %v129 = vunpack.c.l.b16 %v97
    %v130 = vunpack.c.l.b16 %v98
    %v131 = vpack.c.b16 %v116, %v115
    %v132 = vpack.c.b16 %v118, %v117
    %v133 = vpack.c.b16 %v120, %v119
    %v134 = vpack.c.b16 %v122, %v121
    %v135 = vpack.c.b16 %v124, %v123
    %v136 = vpack.c.b16 %v126, %v125
    %v137 = vpack.c.b16 %v128, %v127
    %v138 = vpack.c.b16 %v130, %v129
    %147 = vmatpush.bf16.msra.mxu0 %v138
    %148 = vmatpush.bf16.msra.mxu0 %v137
    %149 = vmatpush.bf16.msra.mxu0 %v136
    %150 = vmatpush.bf16.msra.mxu0 %v135
    %151 = vmatpush.bf16.msra.mxu0 %v134
    %152 = vmatpush.bf16.msra.mxu0 %v133
    %153 = vmatpush.bf16.msra.mxu0 %v132
    %154 = vmatpush.bf16.msra.mxu0 %v131
    %155 = vmatmul.bf16.gmra.mxu0 %v81
    %v156 = vpop.f32.mrf.mxu0
    %v157 = vadd.f32 0.0, %v156
    %v158 = vpop.f32.mrf.mxu0
    %v159 = vadd.f32 0.0, %v158
    %160 = vmatmul.bf16.gmra.mxu0 %v82
    %v161 = vpop.f32.mrf.mxu0
    %v162 = vadd.f32 0.0, %v161
    %v163 = vpop.f32.mrf.mxu0
    %v164 = vadd.f32 0.0, %v163
    %165 = vdwg.mxu0
    %v166 = vadd.f32 %v157, %v159
    %v167 = vadd.f32 %v166, %v162
    %v168 = vadd.f32 %v167, %v164
    %v169 = vrot.slane %v168, 4
    %v170 = vadd.f32 %v168, %v169
    %v171 = vrot.slane %v170, 2
    %v172 = vadd.f32 %v170, %v171
    %v173 = vrot.slane %v172, 1
    %v174 = vadd.f32 %v172, %v173
    %v175 = vmul.f32 %v157, %v157
    %v176 = vmul.f32 %v159, %v159
    %v177 = vmul.f32 %v162, %v162
    %v178 = vmul.f32 %v164, %v164
    %v179 = vadd.f32 %v175, %v176
    %v180 = vadd.f32 %v179, %v177
    %v181 = vadd.f32 %v180, %v178
    %v182 = vrot.slane %v181, 4
    %v183 = vadd.f32 %v181, %v182
    %v184 = vrot.slane %v183, 2
    %v185 = vadd.f32 %v183, %v184
    %v186 = vrot.slane %v185, 1
    %v187 = vadd.f32 %v185, %v186
    %v188 = vmul.f32 %v174, 0.03125
    %v189 = vmul.f32 %v187, 0.03125
    %v190 = vmul.f32 %v188, %v188
    %v191 = vsub.f32 %v189, %v190
    %v192 = vld [vmem:[%s4] sm:$0x1]
    %v193 = vadd.f32 %v191, 1e-05
    %v194 = vrsqrt.pop %v193
    %v195 = vmul.f32 %v194, %v193
    %v196 = vmul.f32 %v195, %v194
    %v197 = vmul.f32 0.5, %v196
    %v198 = vsub.f32 1.5, %v197
    %v199 = vmul.f32 %v194, %v198
    %vm200 = vweird.f32 %v193
    %vm201 = vweird.f32 %v194
    %vm202 = vmor %vm200, %vm201
    %v203 = vsel %vm202, %v194, %v199
    %v204 = vmul.f32 %v192, %v203
    %v205 = vld [vmem:[%s5] sm:$0x1]
    %v206 = vmul.f32 %v188, %v204
    %v207 = vsub.f32 %v205, %v206
    %v209 = vperm.slane %v204, 0
    %v211 = vmul.f32 %v157, %v209
    %v212 = vmul.f32 %v159, %v209
    %v213 = vmul.f32 %v162, %v209
    %v214 = vmul.f32 %v164, %v209
    %v216 = vperm.slane %v207, 0
    %v218 = vadd.f32 %v211, %v216
    %v219 = vadd.f32 %v212, %v216
    %v220 = vadd.f32 %v213, %v216
    %v221 = vadd.f32 %v214, %v216
    %v222 = vmax.f32 %v218, 0.0
    %v223 = vmax.f32 %v219, 0.0
    %v224 = vmax.f32 %v220, 0.0
    %v225 = vmax.f32 %v221, 0.0
    %v226 = vrot.slane %v222, 7
    %v227 = vrot.slane %v223, 7
    %v228 = vrot.slane %v224, 7
    %v229 = vrot.slane %v225, 7
    %v230 = vlaneseq
    %v231 = vshrl.u32 %v230, 7
    %vm232 = vcmp.lt.s32.totalorder %v231, 1
    %v233 = vsel %vm232, %v228, %v229
    %v234 = vsel %vm232, %v227, %v228
    %v235 = vsel %vm232, %v226, %v227
    %v236 = vsel %vm232, %v229, %v226
    %v237 = vld [vmem:[%s10] sm:$0xff]
    %v238 = vld [vmem:[%s10 + $0x8] sm:$0xff]
    %v239 = vld [vmem:[%s10 + $0x10] sm:$0xff]
    %v240 = vld [vmem:[%s10 + $0x18] sm:$0xff]
    %242 = vset.pattern.permute.xlu0 0
    %243 = vperm.xlu0 %242, %v237
    %v244 = vpop.permute.xlu0 %243
    %247 = vset.pattern.permute.xlu0 0
    %248 = vperm.xlu0 %247, %v238
    %v249 = vpop.permute.xlu0 %248
    %252 = vset.pattern.permute.xlu0 0
    %253 = vperm.xlu0 %252, %v239
    %v254 = vpop.permute.xlu0 %253
    %257 = vset.pattern.permute.xlu0 0
    %258 = vperm.xlu0 %257, %v240
    %v259 = vpop.permute.xlu0 %258
    %v261 = vmul.f32 %v236, %v244
    %v262 = vmul.f32 %v235, %v249
    %v263 = vmul.f32 %v234, %v254
    %v264 = vmul.f32 %v233, %v259
    %v265 = vpack.c.bf16 %v262, %v261
    %v266 = vpack.c.bf16 %v264, %v263
    %v267 = vrot.slane %v222, 1
    %v268 = vrot.slane %v223, 1
    %v269 = vrot.slane %v224, 1
    %v270 = vrot.slane %v225, 1
    %vm271 = vcmp.lt.s32.totalorder %v231, 7
    %v272 = vsel %vm271, %v269, %v270
    %v273 = vsel %vm271, %v268, %v269
    %v274 = vsel %vm271, %v267, %v268
    %v275 = vsel %vm271, %v270, %v267
    %v276 = vld [vmem:[%s11] sm:$0xff]
    %v277 = vld [vmem:[%s11 + $0x8] sm:$0xff]
    %v278 = vld [vmem:[%s11 + $0x10] sm:$0xff]
    %v279 = vld [vmem:[%s11 + $0x18] sm:$0xff]
    %281 = vset.pattern.permute.xlu0 0
    %282 = vperm.xlu0 %281, %v276
    %v283 = vpop.permute.xlu0 %282
    %286 = vset.pattern.permute.xlu0 0
    %287 = vperm.xlu0 %286, %v277
    %v288 = vpop.permute.xlu0 %287
    %291 = vset.pattern.permute.xlu0 0
    %292 = vperm.xlu0 %291, %v278
    %v293 = vpop.permute.xlu0 %292
    %296 = vset.pattern.permute.xlu0 0
    %297 = vperm.xlu0 %296, %v279
    %v298 = vpop.permute.xlu0 %297
    %v300 = vmul.f32 %v274, %v283
    %v301 = vmul.f32 %v273, %v288
    %v302 = vmul.f32 %v272, %v293
    %v303 = vmul.f32 %v275, %v298
    %v304 = vpack.c.bf16 %v301, %v300
    %v305 = vpack.c.bf16 %v303, %v302
    %v306 = vpack.c.bf16 %v223, %v222
    %v307 = vpack.c.bf16 %v225, %v224
    %v308 = vld [vmem:[#allocation2] sm:$0xf]
    %v309 = vld [vmem:[#allocation2 + $0x4] sm:$0xf]
    %v310 = vld [vmem:[#allocation2 + $0x8] sm:$0xf]
    %v311 = vld [vmem:[#allocation2 + $0xc] sm:$0xf]
    %v312 = vld [vmem:[#allocation2 + $0x10] sm:$0xf]
    %v313 = vld [vmem:[#allocation2 + $0x14] sm:$0xf]
    %v314 = vld [vmem:[#allocation2 + $0x18] sm:$0xf]
    %v315 = vld [vmem:[#allocation2 + $0x1c] sm:$0xf]
    %v316 = vld [vmem:[#allocation2 + $0x20] sm:$0xf]
    %v317 = vld [vmem:[#allocation2 + $0x24] sm:$0xf]
    %v318 = vld [vmem:[#allocation2 + $0x28] sm:$0xf]
    %v319 = vld [vmem:[#allocation2 + $0x2c] sm:$0xf]
    %v320 = vld [vmem:[#allocation2 + $0x30] sm:$0xf]
    %v321 = vld [vmem:[#allocation2 + $0x34] sm:$0xf]
    %v322 = vld [vmem:[#allocation2 + $0x38] sm:$0xf]
    %v323 = vld [vmem:[#allocation2 + $0x3c] sm:$0xf]
    %s324 = scalar_lea.vmem [#allocation2], 64
    %v325 = vld [vmem:[%s324] sm:$0xf]
    %v326 = vld [vmem:[%s324 + $0x4] sm:$0xf]
    %v327 = vld [vmem:[%s324 + $0x8] sm:$0xf]
    %v328 = vld [vmem:[%s324 + $0xc] sm:$0xf]
    %v329 = vld [vmem:[%s324 + $0x10] sm:$0xf]
    %v330 = vld [vmem:[%s324 + $0x14] sm:$0xf]
    %v331 = vld [vmem:[%s324 + $0x18] sm:$0xf]
    %v332 = vld [vmem:[%s324 + $0x1c] sm:$0xf]
    %v333 = vld [vmem:[%s324 + $0x20] sm:$0xf]
    %v334 = vld [vmem:[%s324 + $0x24] sm:$0xf]
    %v335 = vld [vmem:[%s324 + $0x28] sm:$0xf]
    %v336 = vld [vmem:[%s324 + $0x2c] sm:$0xf]
    %v337 = vld [vmem:[%s324 + $0x30] sm:$0xf]
    %v338 = vld [vmem:[%s324 + $0x34] sm:$0xf]
    %v339 = vld [vmem:[%s324 + $0x38] sm:$0xf]
    %v340 = vld [vmem:[%s324 + $0x3c] sm:$0xf]
    %v357 = vunpack.c.l.b16 %v325
    %v358 = vunpack.c.l.b16 %v326
    %v359 = vunpack.c.l.b16 %v327
    %v360 = vunpack.c.l.b16 %v328
    %v361 = vunpack.c.l.b16 %v329
    %v362 = vunpack.c.l.b16 %v330
    %v363 = vunpack.c.l.b16 %v331
    %v364 = vunpack.c.l.b16 %v332
    %v365 = vunpack.c.l.b16 %v333
    %v366 = vunpack.c.l.b16 %v334
    %v367 = vunpack.c.l.b16 %v335
    %v368 = vunpack.c.l.b16 %v336
    %v369 = vunpack.c.l.b16 %v337
    %v370 = vunpack.c.l.b16 %v338
    %v371 = vunpack.c.l.b16 %v339
    %v372 = vunpack.c.l.b16 %v340
    %v373 = vpack.c.b16 %v358, %v357
    %v374 = vpack.c.b16 %v360, %v359
    %v375 = vpack.c.b16 %v362, %v361
    %v376 = vpack.c.b16 %v364, %v363
    %v377 = vpack.c.b16 %v366, %v365
    %v378 = vpack.c.b16 %v368, %v367
    %v379 = vpack.c.b16 %v370, %v369
    %v380 = vpack.c.b16 %v372, %v371
    %389 = vmatpush.bf16.msra.mxu0 %v380
    %390 = vmatpush.bf16.msra.mxu0 %v379
    %391 = vmatpush.bf16.msra.mxu0 %v378
    %392 = vmatpush.bf16.msra.mxu0 %v377
    %393 = vmatpush.bf16.msra.mxu0 %v376
    %394 = vmatpush.bf16.msra.mxu0 %v375
    %395 = vmatpush.bf16.msra.mxu0 %v374
    %396 = vmatpush.bf16.msra.mxu0 %v373
    %397 = vmatmul.bf16.gmra.mxu0 %v306
    %v398 = vpop.f32.mrf.mxu0
    %v399 = vadd.f32 0.0, %v398
    %v400 = vpop.f32.mrf.mxu0
    %v401 = vadd.f32 0.0, %v400
    %402 = vmatmul.bf16.gmra.mxu0 %v307
    %v403 = vpop.f32.mrf.mxu0
    %v404 = vadd.f32 0.0, %v403
    %v405 = vpop.f32.mrf.mxu0
    %v406 = vadd.f32 0.0, %v405
    %407 = vdwg.mxu0
    %v424 = vunpack.c.l.b16 %v308
    %v425 = vunpack.c.l.b16 %v309
    %v426 = vunpack.c.l.b16 %v310
    %v427 = vunpack.c.l.b16 %v311
    %v428 = vunpack.c.l.b16 %v312
    %v429 = vunpack.c.l.b16 %v313
    %v430 = vunpack.c.l.b16 %v314
    %v431 = vunpack.c.l.b16 %v315
    %v432 = vunpack.c.l.b16 %v316
    %v433 = vunpack.c.l.b16 %v317
    %v434 = vunpack.c.l.b16 %v318
    %v435 = vunpack.c.l.b16 %v319
    %v436 = vunpack.c.l.b16 %v320
    %v437 = vunpack.c.l.b16 %v321
    %v438 = vunpack.c.l.b16 %v322
    %v439 = vunpack.c.l.b16 %v323
    %v440 = vpack.c.b16 %v425, %v424
    %v441 = vpack.c.b16 %v427, %v426
    %v442 = vpack.c.b16 %v429, %v428
    %v443 = vpack.c.b16 %v431, %v430
    %v444 = vpack.c.b16 %v433, %v432
    %v445 = vpack.c.b16 %v435, %v434
    %v446 = vpack.c.b16 %v437, %v436
    %v447 = vpack.c.b16 %v439, %v438
    %456 = vmatpush.bf16.msra.mxu0 %v447
    %457 = vmatpush.bf16.msra.mxu0 %v446
    %458 = vmatpush.bf16.msra.mxu0 %v445
    %459 = vmatpush.bf16.msra.mxu0 %v444
    %460 = vmatpush.bf16.msra.mxu0 %v443
    %461 = vmatpush.bf16.msra.mxu0 %v442
    %462 = vmatpush.bf16.msra.mxu0 %v441
    %463 = vmatpush.bf16.msra.mxu0 %v440
    %464 = vmatmul.bf16.gmra.mxu0 %v265
    %v465 = vpop.f32.mrf.mxu0
    %v466 = vadd.f32 %v399, %v465
    %v467 = vpop.f32.mrf.mxu0
    %v468 = vadd.f32 %v401, %v467
    %469 = vmatmul.bf16.gmra.mxu0 %v266
    %v470 = vpop.f32.mrf.mxu0
    %v471 = vadd.f32 %v404, %v470
    %v472 = vpop.f32.mrf.mxu0
    %v473 = vadd.f32 %v406, %v472
    %474 = vdwg.mxu0
    %s475 = scalar_lea.vmem [#allocation2], 128
    %v476 = vld [vmem:[%s475] sm:$0xf]
    %v477 = vld [vmem:[%s475 + $0x4] sm:$0xf]
    %v478 = vld [vmem:[%s475 + $0x8] sm:$0xf]
    %v479 = vld [vmem:[%s475 + $0xc] sm:$0xf]
    %v480 = vld [vmem:[%s475 + $0x10] sm:$0xf]
    %v481 = vld [vmem:[%s475 + $0x14] sm:$0xf]
    %v482 = vld [vmem:[%s475 + $0x18] sm:$0xf]
    %v483 = vld [vmem:[%s475 + $0x1c] sm:$0xf]
    %v484 = vld [vmem:[%s475 + $0x20] sm:$0xf]
    %v485 = vld [vmem:[%s475 + $0x24] sm:$0xf]
    %v486 = vld [vmem:[%s475 + $0x28] sm:$0xf]
    %v487 = vld [vmem:[%s475 + $0x2c] sm:$0xf]
    %v488 = vld [vmem:[%s475 + $0x30] sm:$0xf]
    %v489 = vld [vmem:[%s475 + $0x34] sm:$0xf]
    %v490 = vld [vmem:[%s475 + $0x38] sm:$0xf]
    %v491 = vld [vmem:[%s475 + $0x3c] sm:$0xf]
    %v508 = vunpack.c.l.b16 %v476
    %v509 = vunpack.c.l.b16 %v477
    %v510 = vunpack.c.l.b16 %v478
    %v511 = vunpack.c.l.b16 %v479
    %v512 = vunpack.c.l.b16 %v480
    %v513 = vunpack.c.l.b16 %v481
    %v514 = vunpack.c.l.b16 %v482
    %v515 = vunpack.c.l.b16 %v483
    %v516 = vunpack.c.l.b16 %v484
    %v517 = vunpack.c.l.b16 %v485
    %v518 = vunpack.c.l.b16 %v486
    %v519 = vunpack.c.l.b16 %v487
    %v520 = vunpack.c.l.b16 %v488
    %v521 = vunpack.c.l.b16 %v489
    %v522 = vunpack.c.l.b16 %v490
    %v523 = vunpack.c.l.b16 %v491
    %v524 = vpack.c.b16 %v509, %v508
    %v525 = vpack.c.b16 %v511, %v510
    %v526 = vpack.c.b16 %v513, %v512
    %v527 = vpack.c.b16 %v515, %v514
    %v528 = vpack.c.b16 %v517, %v516
    %v529 = vpack.c.b16 %v519, %v518
    %v530 = vpack.c.b16 %v521, %v520
    %v531 = vpack.c.b16 %v523, %v522
    %540 = vmatpush.bf16.msra.mxu0 %v531
    %541 = vmatpush.bf16.msra.mxu0 %v530
    %542 = vmatpush.bf16.msra.mxu0 %v529
    %543 = vmatpush.bf16.msra.mxu0 %v528
    %544 = vmatpush.bf16.msra.mxu0 %v527
    %545 = vmatpush.bf16.msra.mxu0 %v526
    %546 = vmatpush.bf16.msra.mxu0 %v525
    %547 = vmatpush.bf16.msra.mxu0 %v524
    %548 = vmatmul.bf16.gmra.mxu0 %v304
    %v549 = vpop.f32.mrf.mxu0
    %v550 = vadd.f32 0.0, %v549
    %v551 = vpop.f32.mrf.mxu0
    %v552 = vadd.f32 0.0, %v551
    %553 = vmatmul.bf16.gmra.mxu0 %v305
    %v554 = vpop.f32.mrf.mxu0
    %v555 = vadd.f32 0.0, %v554
    %v556 = vpop.f32.mrf.mxu0
    %v557 = vadd.f32 0.0, %v556
    %558 = vdwg.mxu0
    %v559 = vadd.f32 %v466, %v550
    %v560 = vadd.f32 %v468, %v552
    %v561 = vadd.f32 %v471, %v555
    %v562 = vadd.f32 %v473, %v557
    %v563 = vadd.f32 %v559, %v560
    %v564 = vadd.f32 %v563, %v561
    %v565 = vadd.f32 %v564, %v562
    %v566 = vrot.slane %v565, 4
    %v567 = vadd.f32 %v565, %v566
    %v568 = vrot.slane %v567, 2
    %v569 = vadd.f32 %v567, %v568
    %v570 = vrot.slane %v569, 1
    %v571 = vadd.f32 %v569, %v570
    %v572 = vmul.f32 %v559, %v559
    %v573 = vmul.f32 %v560, %v560
    %v574 = vmul.f32 %v561, %v561
    %v575 = vmul.f32 %v562, %v562
    %v576 = vadd.f32 %v572, %v573
    %v577 = vadd.f32 %v576, %v574
    %v578 = vadd.f32 %v577, %v575
    %v579 = vrot.slane %v578, 4
    %v580 = vadd.f32 %v578, %v579
    %v581 = vrot.slane %v580, 2
    %v582 = vadd.f32 %v580, %v581
    %v583 = vrot.slane %v582, 1
    %v584 = vadd.f32 %v582, %v583
    %v585 = vmul.f32 %v571, 0.03125
    %v586 = vmul.f32 %v584, 0.03125
    %v587 = vmul.f32 %v585, %v585
    %v588 = vsub.f32 %v586, %v587
    %v589 = vld [vmem:[%s6] sm:$0x1]
    %v590 = vadd.f32 %v588, 1e-05
    %v591 = vrsqrt.pop %v590
    %v592 = vmul.f32 %v591, %v590
    %v593 = vmul.f32 %v592, %v591
    %v594 = vmul.f32 0.5, %v593
    %v595 = vsub.f32 1.5, %v594
    %v596 = vmul.f32 %v591, %v595
    %vm597 = vweird.f32 %v590
    %vm598 = vweird.f32 %v591
    %vm599 = vmor %vm597, %vm598
    %v600 = vsel %vm599, %v591, %v596
    %v601 = vmul.f32 %v589, %v600
    %v602 = vld [vmem:[%s7] sm:$0x1]
    %v603 = vmul.f32 %v585, %v601
    %v604 = vsub.f32 %v602, %v603
    %v606 = vperm.slane %v601, 0
    %v608 = vmul.f32 %v559, %v606
    %v609 = vmul.f32 %v560, %v606
    %v610 = vmul.f32 %v561, %v606
    %v611 = vmul.f32 %v562, %v606
    %v613 = vperm.slane %v604, 0
    %v615 = vadd.f32 %v608, %v613
    %v616 = vadd.f32 %v609, %v613
    %v617 = vadd.f32 %v610, %v613
    %v618 = vadd.f32 %v611, %v613
    %v619 = vmax.f32 %v615, 0.0
    %v620 = vmax.f32 %v616, 0.0
    %v621 = vmax.f32 %v617, 0.0
    %v622 = vmax.f32 %v618, 0.0
    %v623 = vpack.c.bf16 %v620, %v619
    %v624 = vpack.c.bf16 %v622, %v621
    %v625 = vld [vmem:[#allocation5] sm:$0xf]
    %v626 = vld [vmem:[#allocation5 + $0x4] sm:$0xf]
    %v627 = vld [vmem:[#allocation5 + $0x8] sm:$0xf]
    %v628 = vld [vmem:[#allocation5 + $0xc] sm:$0xf]
    %v629 = vld [vmem:[#allocation5 + $0x10] sm:$0xf]
    %v630 = vld [vmem:[#allocation5 + $0x14] sm:$0xf]
    %v631 = vld [vmem:[#allocation5 + $0x18] sm:$0xf]
    %v632 = vld [vmem:[#allocation5 + $0x1c] sm:$0xf]
    %v633 = vld [vmem:[#allocation5 + $0x20] sm:$0xf]
    %v634 = vld [vmem:[#allocation5 + $0x24] sm:$0xf]
    %v635 = vld [vmem:[#allocation5 + $0x28] sm:$0xf]
    %v636 = vld [vmem:[#allocation5 + $0x2c] sm:$0xf]
    %v637 = vld [vmem:[#allocation5 + $0x30] sm:$0xf]
    %v638 = vld [vmem:[#allocation5 + $0x34] sm:$0xf]
    %v639 = vld [vmem:[#allocation5 + $0x38] sm:$0xf]
    %v640 = vld [vmem:[#allocation5 + $0x3c] sm:$0xf]
    %v657 = vunpack.c.l.b16 %v625
    %v658 = vunpack.c.l.b16 %v626
    %v659 = vunpack.c.l.b16 %v627
    %v660 = vunpack.c.l.b16 %v628
    %v661 = vunpack.c.l.b16 %v629
    %v662 = vunpack.c.l.b16 %v630
    %v663 = vunpack.c.l.b16 %v631
    %v664 = vunpack.c.l.b16 %v632
    %v665 = vunpack.c.l.b16 %v633
    %v666 = vunpack.c.l.b16 %v634
    %v667 = vunpack.c.l.b16 %v635
    %v668 = vunpack.c.l.b16 %v636
    %v669 = vunpack.c.l.b16 %v637
    %v670 = vunpack.c.l.b16 %v638
    %v671 = vunpack.c.l.b16 %v639
    %v672 = vunpack.c.l.b16 %v640
    %v673 = vpack.c.b16 %v658, %v657
    %v674 = vpack.c.b16 %v660, %v659
    %v675 = vpack.c.b16 %v662, %v661
    %v676 = vpack.c.b16 %v664, %v663
    %v677 = vpack.c.b16 %v666, %v665
    %v678 = vpack.c.b16 %v668, %v667
    %v679 = vpack.c.b16 %v670, %v669
    %v680 = vpack.c.b16 %v672, %v671
    %689 = vmatpush.bf16.msra.mxu0 %v680
    %690 = vmatpush.bf16.msra.mxu0 %v679
    %691 = vmatpush.bf16.msra.mxu0 %v678
    %692 = vmatpush.bf16.msra.mxu0 %v677
    %693 = vmatpush.bf16.msra.mxu0 %v676
    %694 = vmatpush.bf16.msra.mxu0 %v675
    %695 = vmatpush.bf16.msra.mxu0 %v674
    %696 = vmatpush.bf16.msra.mxu0 %v673
    %697 = vmatmul.bf16.gmra.mxu0 %v623
    %v698 = vpop.f32.mrf.mxu0
    %v699 = vadd.f32 0.0, %v698
    %v700 = vpop.f32.mrf.mxu0
    %v701 = vadd.f32 0.0, %v700
    %702 = vmatmul.bf16.gmra.mxu0 %v624
    %v703 = vpop.f32.mrf.mxu0
    %v704 = vadd.f32 0.0, %v703
    %v705 = vpop.f32.mrf.mxu0
    %v706 = vadd.f32 0.0, %v705
    %707 = vdwg.mxu0
    %v708 = vadd.f32 %v699, %v701
    %v709 = vadd.f32 %v708, %v704
    %v710 = vadd.f32 %v709, %v706
    %v711 = vrot.slane %v710, 4
    %v712 = vadd.f32 %v710, %v711
    %v713 = vrot.slane %v712, 2
    %v714 = vadd.f32 %v712, %v713
    %v715 = vrot.slane %v714, 1
    %v716 = vadd.f32 %v714, %v715
    %v717 = vmul.f32 %v699, %v699
    %v718 = vmul.f32 %v701, %v701
    %v719 = vmul.f32 %v704, %v704
    %v720 = vmul.f32 %v706, %v706
    %v721 = vadd.f32 %v717, %v718
    %v722 = vadd.f32 %v721, %v719
    %v723 = vadd.f32 %v722, %v720
    %v724 = vrot.slane %v723, 4
    %v725 = vadd.f32 %v723, %v724
    %v726 = vrot.slane %v725, 2
    %v727 = vadd.f32 %v725, %v726
    %v728 = vrot.slane %v727, 1
    %v729 = vadd.f32 %v727, %v728
    %v730 = vmul.f32 %v716, 0.03125
    %v731 = vmul.f32 %v729, 0.03125
    %v732 = vmul.f32 %v730, %v730
    %v733 = vsub.f32 %v731, %v732
    %v734 = vld [vmem:[%s8] sm:$0x1]
    %v735 = vadd.f32 %v733, 1e-05
    %v736 = vrsqrt.pop %v735
    %v737 = vmul.f32 %v736, %v735
    %v738 = vmul.f32 %v737, %v736
    %v739 = vmul.f32 0.5, %v738
    %v740 = vsub.f32 1.5, %v739
    %v741 = vmul.f32 %v736, %v740
    %vm742 = vweird.f32 %v735
    %vm743 = vweird.f32 %v736
    %vm744 = vmor %vm742, %vm743
    %v745 = vsel %vm744, %v736, %v741
    %v746 = vmul.f32 %v734, %v745
    %v747 = vld [vmem:[%s9] sm:$0x1]
    %v748 = vmul.f32 %v730, %v746
    %v749 = vsub.f32 %v747, %v748
    %v751 = vperm.slane %v746, 0
    %v753 = vmul.f32 %v699, %v751
    %v754 = vmul.f32 %v701, %v751
    %v755 = vmul.f32 %v704, %v751
    %v756 = vmul.f32 %v706, %v751
    %v758 = vperm.slane %v749, 0
    %v760 = vadd.f32 %v753, %v758
    %v761 = vadd.f32 %v754, %v758
    %v762 = vadd.f32 %v755, %v758
    %v763 = vadd.f32 %v756, %v758
    %v764 = vadd.f32 %v760, %v77
    %v765 = vadd.f32 %v761, %v78
    %v766 = vadd.f32 %v762, %v79
    %v767 = vadd.f32 %v763, %v80
    %v768 = vmax.f32 %v764, 0.0
    %v769 = vmax.f32 %v765, 0.0
    %v770 = vmax.f32 %v766, 0.0
    %v771 = vmax.f32 %v767, 0.0
    %772 = vst [vmem:[#allocation7] sm:$0xff] %v768
    %773 = vst [vmem:[#allocation7 + $0x8] sm:$0xff] %v769
    %774 = vst [vmem:[#allocation7 + $0x10] sm:$0xff] %v770
    %775 = vst [vmem:[#allocation7 + $0x18] sm:$0xff] %v771
    // Predicated region
    $region62: #{tpu_custom_call.1} parent=1 // pred_check
      _
    $region63: #{tpu_custom_call.1} parent=1 // pred_check_branch
      %777 = sbr.rel (0) target = $region65
    $region64: #{tpu_custom_call.1} parent=1 // pred_region
      %779 = vsyncadd [#allocation4], 0
      %s780 = sshll.u32 [#allocation7], 4
      %s781 = int_to_ptr.vmem [resolvable:$true] %s780
      %s782 = sshll.u32 %s13, 4
      %s783 = int_to_ptr.hbm [resolvable:$true] %s782
      %788 = dma.vmem_to_hbm [thread:$0]  %s781, 512, %s783, [#allocation4], 128, 128, 8
    $region65: #{tpu_custom_call.1} parent=1 // pred_fallthru
      _
    // Predicated region
    $region66: #{tpu_custom_call.1} parent=1 // pred_check
      _
    $region67: #{tpu_custom_call.1} parent=1 // pred_check_branch
      %790 = sbr.rel (0) target = $region69
    $region68: #{tpu_custom_call.1} parent=1 // pred_region
      %792 = dma.done [#allocation4], 512
    $region69: #{tpu_custom_call.1} parent=1 // pred_fallthru
      _
    %793 = vsyncpa [#allocation3], 1
    %794 = vsyncpa [#allocation6], 1
    %795 = vsyncpa [#allocation4], 1

</llo_original>
